<compile_context>
chip_gen: v7x
topology: tpu7x:2x2x1
jax: 0.10.0
libtpu: 0.0.40
codegen_flags: <defaults>
</compile_context>

<pallas_src>
import functools

import jax
import jax.numpy as jnp
from jax import lax
from jax.experimental import pallas as pl
from jax.experimental.pallas import tpu as pltpu


def _conv_pre_wav_kernel(x_ref, hl_ref, hr_ref, w1_ref, w2_ref,
                         s1_ref, b1_ref, s2_ref, b2_ref, o_ref,
                         *, TL, pool, L):
    """One (batch, time-tile) block per grid step.

    x_ref  : (1, TL, Cin)      current time tile (compute dtype)
    hl_ref : (1, 1, 8, Cin)    8 rows immediately before the tile (pre-zeroed OOB)
    hr_ref : (1, 1, 8, Cin)    8 rows immediately after the tile (pre-zeroed OOB)
    w1_ref : (3*Cin, Cout)     conv1 weights, taps folded into K
    w2_ref : (3*Cout, Cout)    conv2 weights (dilation 2), taps folded into K
    s*/b*  : (1, Cout)         folded BatchNorm scale / bias (f32)
    o_ref  : (1, TL // pool, Cout)
    """
    t = pl.program_id(1)
    TLH = TL + 8                          # conv1 output rows kept (+-4 halo)

    # Input window [left halo | tile | right halo]; window row w corresponds
    # to original time index t*TL - 8 + w.
    x_win = jnp.concatenate([hl_ref[0, 0], x_ref[0], hr_ref[0, 0]], axis=0)

    # ---- conv1 (k=3, pad=1): single matmul with K = 3*Cin ------------------
    # h1 row r <-> original index j = t*TL - 4 + r, needs x[j-1], x[j], x[j+1]
    # which are window rows r+3, r+4, r+5.
    slab1 = jnp.concatenate(
        [x_win[3:3 + TLH], x_win[4:4 + TLH], x_win[5:5 + TLH]], axis=-1)
    h1 = jnp.dot(slab1, w1_ref[...], preferred_element_type=jnp.float32)
    h1 = jnp.maximum(h1 * s1_ref[...] + b1_ref[...], 0.0)

    # conv2's zero padding: rows whose original index is outside [0, L) must
    # be exactly zero (BN bias + ReLU would otherwise leak over the boundary).
    row = t * TL - 4 + lax.broadcasted_iota(jnp.int32, (TLH, 1), 0)
    h1 = jnp.where((row >= 0) & (row < L), h1, 0.0)
    h1c = h1.astype(w2_ref.dtype)

    # ---- conv2 (k=3, dilation=2, pad=2): single matmul with K = 3*Cout -----
    # Output row q (original index t*TL + q) needs h1 rows q+2, q+4, q+6.
    slab2 = jnp.concatenate(
        [h1c[2:2 + TL], h1c[4:4 + TL], h1c[6:6 + TL]], axis=-1)
    h2 = jnp.dot(slab2, w2_ref[...], preferred_element_type=jnp.float32)
    h2 = jnp.maximum(h2 * s2_ref[...] + b2_ref[...], 0.0)

    # ---- max_pool1d(kernel=pool, stride=pool); windows stay inside the tile.
    pooled = jnp.max(h2.reshape(TL // pool, pool, h2.shape[-1]), axis=1)
    o_ref[0] = pooled.astype(o_ref.dtype)


def _choose_tile_l(L, pool, target=512):
    """Largest time tile <= target that divides L and keeps blocks (8,128)-legal."""
    if L <= target:
        return L
    step = 8 * pool                        # TL % pool == 0 and (TL//pool) % 8 == 0
    cand = (target // step) * step
    while cand >= step:
        if L % cand == 0:
            return cand
        cand -= step
    return L                               # fall back to a single whole-L tile


def conv_pre_wav_block(x_ncl, w1, w2, bn1, bn2, pool_size, *,
                       tile_l=None, compute_dtype=jnp.float32):
    """x_ncl: (B, Cin, L). w1: (Cout, Cin, 3). w2: (Cout, Cout, 3).

    bn* = (gamma, beta, running_mean, running_var, eps)  (eval-mode BN).
    Returns (B, Cout, L // pool_size), matching the PyTorch module.
    """
    B, Cin, L = x_ncl.shape
    Cout = w1.shape[0]
    assert L % pool_size == 0, "L must be divisible by pool_size"

    TL = tile_l if tile_l is not None else _choose_tile_l(L, pool_size)
    assert L % TL == 0 and TL % pool_size == 0
    NT = L // TL
    if NT > 1:
        assert TL % 8 == 0 and (TL // pool_size) % 8 == 0, "tile not (8,128)-legal"
    TLo = TL // pool_size
    Lo = L // pool_size

    # NCL -> channels-last (B, L, Cin): channels on the lane axis, convs become
    # shifted (L, Cin) @ (Cin, Cout) MXU matmuls.
    x_blc = jnp.transpose(x_ncl, (0, 2, 1))
    x_main = x_blc.astype(compute_dtype)

    # 8-row halo strips around every tile (zeros outside [0, L)).  Tiny arrays;
    # this replaces a full-waveform jnp.pad + overlapping-window copies.
    def gather_halo(starts):
        idx = starts[:, None] + jnp.arange(8, dtype=jnp.int32)[None, :]   # (NT, 8)
        valid = (idx >= 0) & (idx < L)
        g = jnp.take(x_blc, jnp.clip(idx, 0, L - 1), axis=1)              # (B,NT,8,Cin)
        return jnp.where(valid[None, :, :, None], g, 0.0).astype(compute_dtype)

    tile_starts = jnp.arange(NT, dtype=jnp.int32) * TL
    halo_l = gather_halo(tile_starts - 8)
    halo_r = gather_halo(tile_starts + TL)

    # torch conv weight (Cout, Cin, K) -> folded (K*Cin, Cout), tap-major rows.
    W1 = jnp.transpose(w1, (2, 1, 0)).reshape(3 * Cin, Cout).astype(compute_dtype)
    W2 = jnp.transpose(w2, (2, 1, 0)).reshape(3 * Cout, Cout).astype(compute_dtype)

    def fold_bn(bn):
        gamma, beta, mean, var, eps = bn
        scale = gamma / jnp.sqrt(var + eps)
        bias = beta - mean * scale
        return (scale.reshape(1, -1).astype(jnp.float32),
                bias.reshape(1, -1).astype(jnp.float32))

    s1, b1 = fold_bn(bn1)
    s2, b2 = fold_bn(bn2)

    kernel = functools.partial(_conv_pre_wav_kernel, TL=TL, pool=pool_size, L=L)

    # Explicit VMEM budget: double-buffered inputs/outputs + live intermediates,
    # clamped so it stays legal on v7x's 64 MiB of physical VMEM.
    isz = jnp.dtype(compute_dtype).itemsize
    est = (2 * TL * Cin * isz + 4 * 8 * Cin * isz          # x tile + halos (x2 buffers)
           + 2 * TLo * Cout * 4                            # output tile (x2 buffers)
           + (3 * Cin + 3 * Cout) * Cout * isz             # folded weights
           + 8 * Cout * 4                                  # BN scale / bias
           + 12 * (TL + 16) * max(3 * Cin, 3 * Cout) * 4)  # intermediates headroom
    vmem_limit = int(min(max(2 * est, 32 * 2 ** 20), 48 * 2 ** 20))

    out_blc = pl.pallas_call(
        kernel,
        out_shape=jax.ShapeDtypeStruct((B, Lo, Cout), x_ncl.dtype),
        grid_spec=pltpu.PrefetchScalarGridSpec(
            num_scalar_prefetch=0,
            grid=(B, NT),
            in_specs=[
                pl.BlockSpec((1, TL, Cin), lambda b, t: (b, t, 0)),
                pl.BlockSpec((1, 1, 8, Cin), lambda b, t: (b, t, 0, 0)),
                pl.BlockSpec((1, 1, 8, Cin), lambda b, t: (b, t, 0, 0)),
                pl.BlockSpec((3 * Cin, Cout), lambda b, t: (0, 0)),
                pl.BlockSpec((3 * Cout, Cout), lambda b, t: (0, 0)),
                pl.BlockSpec((1, Cout), lambda b, t: (0, 0)),
                pl.BlockSpec((1, Cout), lambda b, t: (0, 0)),
                pl.BlockSpec((1, Cout), lambda b, t: (0, 0)),
                pl.BlockSpec((1, Cout), lambda b, t: (0, 0)),
            ],
            out_specs=pl.BlockSpec((1, TLo, Cout), lambda b, t: (b, t, 0)),
        ),
        compiler_params=pltpu.CompilerParams(
            dimension_semantics=("parallel", "parallel"),
            vmem_limit_bytes=vmem_limit),
    )(x_main, halo_l, halo_r, W1, W2, s1, b1, s2, b2)

    return jnp.transpose(out_blc, (0, 2, 1))               # back to NCL


# ------------------------ reference (pure JAX) -------------------------------
def _reference(x_ncl, w1, w2, bn1, bn2, pool_size):
    def bn_relu(y, bn):
        gamma, beta, mean, var, eps = bn
        s = (gamma / jnp.sqrt(var + eps))[None, :, None]
        b = (beta - mean * gamma / jnp.sqrt(var + eps))[None, :, None]
        return jnp.maximum(y * s + b, 0.0)

    dn = lax.conv_dimension_numbers(x_ncl.shape, w1.shape, ("NCH", "OIH", "NCH"))
    y = lax.conv_general_dilated(x_ncl, w1, (1,), [(1, 1)], dimension_numbers=dn,
                                 precision=lax.Precision.HIGHEST)
    y = bn_relu(y, bn1)
    y = lax.conv_general_dilated(y, w2, (1,), [(2, 2)], rhs_dilation=(2,),
                                 dimension_numbers=dn,
                                 precision=lax.Precision.HIGHEST)
    y = bn_relu(y, bn2)
    B, C, L = y.shape
    y = y[:, :, :(L // pool_size) * pool_size]
    y = y.reshape(B, C, L // pool_size, pool_size).max(axis=-1)
    return y


def _xavier_uniform_conv1d(key, cout, cin, k):
    fan_in, fan_out = cin * k, cout * k
    bound = (6.0 / (fan_in + fan_out)) ** 0.5
    return jax.random.uniform(key, (cout, cin, k), jnp.float32, -bound, bound)


if __name__ == "__main__":
    def make_inputs(seed, B, Cin, Cout, L):
        key = jax.random.PRNGKey(seed)
        ks = jax.random.split(key, 11)
        x = jax.random.normal(ks[0], (B, Cin, L), jnp.float32)
        w1 = _xavier_uniform_conv1d(ks[1], Cout, Cin, 3)
        w2 = _xavier_uniform_conv1d(ks[2], Cout, Cout, 3)
        eps = 1e-5

        def bn(kg, kb, km, kv):
            return (jax.random.uniform(kg, (Cout,), jnp.float32, 0.5, 1.5),  # gamma
                    0.2 * jax.random.normal(kb, (Cout,), jnp.float32),       # beta
                    0.2 * jax.random.normal(km, (Cout,), jnp.float32),       # running mean
                    jax.random.uniform(kv, (Cout,), jnp.float32, 0.5, 1.5),  # running var
                    eps)

        return x, w1, w2, bn(ks[3], ks[4], ks[5], ks[6]), bn(ks[7], ks[8], ks[9], ks[10])

    cases = [
        dict(name="tiny-f32", B=2, Cin=4, Cout=8, L=16, pool=4,
             tile_l=None, dtype=jnp.float32, rtol=1e-4, atol=1e-4),
        dict(name="tiled-f32", B=2, Cin=4, Cout=8, L=512, pool=4,
             tile_l=128, dtype=jnp.float32, rtol=1e-4, atol=1e-4),
        dict(name="tiled-bf16", B=2, Cin=4, Cout=8, L=512, pool=4,
             tile_l=128, dtype=jnp.bfloat16, rtol=1e-1, atol=1e-1),
    ]

    for c in cases:
        x, w1, w2, bn1, bn2 = make_inputs(0, c["B"], c["Cin"], c["Cout"], c["L"])
        out = conv_pre_wav_block(x, w1, w2, bn1, bn2, c["pool"],
                                 tile_l=c["tile_l"], compute_dtype=c["dtype"])
        out = jax.block_until_ready(out)
        ref = _reference(x, w1, w2, bn1, bn2, c["pool"])
        assert out.shape == (c["B"], c["Cout"], c["L"] // c["pool"]), (c["name"], out.shape)
        max_err = float(jnp.max(jnp.abs(out - ref)))
        assert jnp.allclose(out, ref, rtol=c["rtol"], atol=c["atol"]), (c["name"], max_err)

    print("KERNEL_OK")
</pallas_src>

<mosaic_0001>
module attributes {stable_mosaic.version = 11 : i64} {
  func.func @_conv_pre_wav_kernel(%arg0: i32, %arg1: i32, %arg2: memref<1x16x4xf32, #tpu.memory_space<vmem>>, %arg3: memref<1x1x8x4xf32, #tpu.memory_space<vmem>>, %arg4: memref<1x1x8x4xf32, #tpu.memory_space<vmem>>, %arg5: memref<12x8xf32, #tpu.memory_space<vmem>>, %arg6: memref<24x8xf32, #tpu.memory_space<vmem>>, %arg7: memref<1x8xf32, #tpu.memory_space<vmem>>, %arg8: memref<1x8xf32, #tpu.memory_space<vmem>>, %arg9: memref<1x8xf32, #tpu.memory_space<vmem>>, %arg10: memref<1x8xf32, #tpu.memory_space<vmem>>, %arg11: memref<1x4x8xf32, #tpu.memory_space<vmem>>) attributes {dimension_semantics = [#tpu.dimension_semantics<parallel>, #tpu.dimension_semantics<parallel>], iteration_bounds = array<i64: 2, 1>, scalar_prefetch = 0 : i64, scratch_operands = 0 : i64, tpu.core_type = #tpu.core_type<tc>, window_params = [{transform_indices = @transform_0, window_bounds = array<i64: 1, 16, 4>}, {transform_indices = @transform_1, window_bounds = array<i64: 1, 1, 8, 4>}, {transform_indices = @transform_2, window_bounds = array<i64: 1, 1, 8, 4>}, {pipeline_mode = #tpu.pipeline_mode<synchronous>, transform_indices = @transform_3, window_bounds = array<i64: 12, 8>}, {pipeline_mode = #tpu.pipeline_mode<synchronous>, transform_indices = @transform_4, window_bounds = array<i64: 24, 8>}, {pipeline_mode = #tpu.pipeline_mode<synchronous>, transform_indices = @transform_5, window_bounds = array<i64: 1, 8>}, {pipeline_mode = #tpu.pipeline_mode<synchronous>, transform_indices = @transform_6, window_bounds = array<i64: 1, 8>}, {pipeline_mode = #tpu.pipeline_mode<synchronous>, transform_indices = @transform_7, window_bounds = array<i64: 1, 8>}, {pipeline_mode = #tpu.pipeline_mode<synchronous>, transform_indices = @transform_8, window_bounds = array<i64: 1, 8>}, {transform_indices = @transform_9, window_bounds = array<i64: 1, 4, 8>}]} {
    %c0 = arith.constant 0 : index
    %c0_0 = arith.constant 0 : index
    %c0_1 = arith.constant 0 : index
    %c0_2 = arith.constant 0 : index
    %0 = vector.load %arg3[%c0, %c0_0, %c0_1, %c0_2] : memref<1x1x8x4xf32, #tpu.memory_space<vmem>>, vector<1x1x8x4xf32>
    %1 = vector.shape_cast %0 : vector<1x1x8x4xf32> to vector<8x4xf32>
    %c0_3 = arith.constant 0 : index
    %c0_4 = arith.constant 0 : index
    %c0_5 = arith.constant 0 : index
    %2 = vector.load %arg2[%c0_3, %c0_4, %c0_5] : memref<1x16x4xf32, #tpu.memory_space<vmem>>, vector<1x16x4xf32>
    %3 = vector.shape_cast %2 : vector<1x16x4xf32> to vector<16x4xf32>
    %c0_6 = arith.constant 0 : index
    %c0_7 = arith.constant 0 : index
    %c0_8 = arith.constant 0 : index
    %c0_9 = arith.constant 0 : index
    %4 = vector.load %arg4[%c0_6, %c0_7, %c0_8, %c0_9] : memref<1x1x8x4xf32, #tpu.memory_space<vmem>>, vector<1x1x8x4xf32>
    %5 = vector.shape_cast %4 : vector<1x1x8x4xf32> to vector<8x4xf32>
    %6 = tpu.concatenate %1, %3, %5 in 0 : vector<8x4xf32>, vector<16x4xf32>, vector<8x4xf32> -> vector<32x4xf32>
    %7 = vector.extract_strided_slice %6 {offsets = [3, 0], sizes = [24, 4], strides = [1, 1]} : vector<32x4xf32> to vector<24x4xf32>
    %8 = vector.extract_strided_slice %6 {offsets = [4, 0], sizes = [24, 4], strides = [1, 1]} : vector<32x4xf32> to vector<24x4xf32>
    %9 = vector.extract_strided_slice %6 {offsets = [5, 0], sizes = [24, 4], strides = [1, 1]} : vector<32x4xf32> to vector<24x4xf32>
    %10 = tpu.concatenate %7, %8, %9 in 1 : vector<24x4xf32>, vector<24x4xf32>, vector<24x4xf32> -> vector<24x12xf32>
    %c0_10 = arith.constant 0 : index
    %c0_11 = arith.constant 0 : index
    %11 = vector.load %arg5[%c0_10, %c0_11] : memref<12x8xf32, #tpu.memory_space<vmem>>, vector<12x8xf32>
    %cst = arith.constant dense<0.000000e+00> : vector<24x8xf32>
    %12 = tpu.matmul %10, %11, %cst {dimension_numbers = #tpu.dot_dimension_numbers<[1], [0], [0], [1], [0, 0, 1, 1], [], []>} : vector<24x12xf32>, vector<12x8xf32>, vector<24x8xf32> -> vector<24x8xf32>
    %c0_12 = arith.constant 0 : index
    %c0_13 = arith.constant 0 : index
    %13 = vector.load %arg7[%c0_12, %c0_13] : memref<1x8xf32, #tpu.memory_space<vmem>>, vector<1x8xf32>
    %14 = vector.broadcast %13 : vector<1x8xf32> to vector<24x8xf32>
    %15 = arith.mulf %12, %14 : vector<24x8xf32>
    %c0_14 = arith.constant 0 : index
    %c0_15 = arith.constant 0 : index
    %16 = vector.load %arg8[%c0_14, %c0_15] : memref<1x8xf32, #tpu.memory_space<vmem>>, vector<1x8xf32>
    %17 = vector.broadcast %16 : vector<1x8xf32> to vector<24x8xf32>
    %18 = arith.addf %15, %17 : vector<24x8xf32>
    %cst_16 = arith.constant 0.000000e+00 : f32
    %19 = vector.broadcast %cst_16 : f32 to vector<24x8xf32>
    %20 = arith.maximumf %18, %19 : vector<24x8xf32>
    %c16_i32 = arith.constant 16 : i32
    %21 = arith.muli %arg1, %c16_i32 : i32
    %c4_i32 = arith.constant 4 : i32
    %22 = arith.subi %21, %c4_i32 : i32
    %23 = tpu.iota {dimensions = array<i32: 0>} : vector<24x1xi32>
    %24 = vector.broadcast %22 : i32 to vector<24x1xi32>
    %25 = arith.addi %24, %23 : vector<24x1xi32>
    %c0_i32 = arith.constant 0 : i32
    %26 = vector.broadcast %c0_i32 : i32 to vector<24x1xi32>
    %27 = arith.cmpi sge, %25, %26 : vector<24x1xi32>
    %c16_i32_17 = arith.constant 16 : i32
    %28 = vector.broadcast %c16_i32_17 : i32 to vector<24x1xi32>
    %29 = arith.cmpi slt, %25, %28 : vector<24x1xi32>
    %30 = arith.andi %27, %29 : vector<24x1xi1>
    %cst_18 = arith.constant 0.000000e+00 : f32
    %31 = vector.shape_cast %30 : vector<24x1xi1> to vector<24x1xi1>
    %32 = vector.broadcast %31 : vector<24x1xi1> to vector<24x8xi1>
    %33 = vector.broadcast %cst_18 : f32 to vector<24x8xf32>
    %34 = arith.select %32, %20, %33 : vector<24x8xi1>, vector<24x8xf32>
    %35 = vector.extract_strided_slice %34 {offsets = [2, 0], sizes = [16, 8], strides = [1, 1]} : vector<24x8xf32> to vector<16x8xf32>
    %36 = vector.extract_strided_slice %34 {offsets = [4, 0], sizes = [16, 8], strides = [1, 1]} : vector<24x8xf32> to vector<16x8xf32>
    %37 = vector.extract_strided_slice %34 {offsets = [6, 0], sizes = [16, 8], strides = [1, 1]} : vector<24x8xf32> to vector<16x8xf32>
    %38 = tpu.concatenate %35, %36, %37 in 1 : vector<16x8xf32>, vector<16x8xf32>, vector<16x8xf32> -> vector<16x24xf32>
    %c0_19 = arith.constant 0 : index
    %c0_20 = arith.constant 0 : index
    %39 = vector.load %arg6[%c0_19, %c0_20] : memref<24x8xf32, #tpu.memory_space<vmem>>, vector<24x8xf32>
    %cst_21 = arith.constant dense<0.000000e+00> : vector<16x8xf32>
    %40 = tpu.matmul %38, %39, %cst_21 {dimension_numbers = #tpu.dot_dimension_numbers<[1], [0], [0], [1], [0, 0, 1, 1], [], []>} : vector<16x24xf32>, vector<24x8xf32>, vector<16x8xf32> -> vector<16x8xf32>
    %c0_22 = arith.constant 0 : index
    %c0_23 = arith.constant 0 : index
    %41 = vector.load %arg9[%c0_22, %c0_23] : memref<1x8xf32, #tpu.memory_space<vmem>>, vector<1x8xf32>
    %42 = vector.broadcast %41 : vector<1x8xf32> to vector<16x8xf32>
    %43 = arith.mulf %40, %42 : vector<16x8xf32>
    %c0_24 = arith.constant 0 : index
    %c0_25 = arith.constant 0 : index
    %44 = vector.load %arg10[%c0_24, %c0_25] : memref<1x8xf32, #tpu.memory_space<vmem>>, vector<1x8xf32>
    %45 = vector.broadcast %44 : vector<1x8xf32> to vector<16x8xf32>
    %46 = arith.addf %43, %45 : vector<16x8xf32>
    %cst_26 = arith.constant 0.000000e+00 : f32
    %47 = vector.broadcast %cst_26 : f32 to vector<16x8xf32>
    %48 = arith.maximumf %46, %47 : vector<16x8xf32>
    %49 = vector.shape_cast %48 : vector<16x8xf32> to vector<4x4x8xf32>
    %cst_27 = arith.constant dense<0xFF800000> : vector<4x8xf32>
    %50 = vector.multi_reduction <maximumf>, %49, %cst_27 [1] : vector<4x4x8xf32> to vector<4x8xf32>
    %c0_28 = arith.constant 0 : index
    %c0_29 = arith.constant 0 : index
    %c0_30 = arith.constant 0 : index
    %51 = vector.load %arg11[%c0_28, %c0_29, %c0_30] : memref<1x4x8xf32, #tpu.memory_space<vmem>>, vector<1x4x8xf32>
    %52 = vector.shape_cast %51 : vector<1x4x8xf32> to vector<4x8xf32>
    %53 = vector.shape_cast %50 : vector<4x8xf32> to vector<1x4x8xf32>
    tpu.vector_store %arg11[%c0_28, %c0_29, %c0_30], %53 {strides = array<i32>} : memref<1x4x8xf32, #tpu.memory_space<vmem>>, vector<1x4x8xf32>,
    return
  }
  func.func @transform_0(%arg0: i32, %arg1: i32) -> (i32, i32, i32) {
    %c0_i32 = arith.constant 0 : i32
    %c0_i32_0 = arith.constant 0 : i32
    return %arg0, %arg1, %c0_i32 : i32, i32, i32
  }
  func.func @transform_1(%arg0: i32, %arg1: i32) -> (i32, i32, i32, i32) {
    %c0_i32 = arith.constant 0 : i32
    %c0_i32_0 = arith.constant 0 : i32
    %c0_i32_1 = arith.constant 0 : i32
    return %arg0, %arg1, %c0_i32, %c0_i32_0 : i32, i32, i32, i32
  }
  func.func @transform_2(%arg0: i32, %arg1: i32) -> (i32, i32, i32, i32) {
    %c0_i32 = arith.constant 0 : i32
    %c0_i32_0 = arith.constant 0 : i32
    %c0_i32_1 = arith.constant 0 : i32
    return %arg0, %arg1, %c0_i32, %c0_i32_0 : i32, i32, i32, i32
  }
  func.func @transform_3(%arg0: i32, %arg1: i32) -> (i32, i32) {
    %c0_i32 = arith.constant 0 : i32
    %c0_i32_0 = arith.constant 0 : i32
    %c0_i32_1 = arith.constant 0 : i32
    return %c0_i32, %c0_i32_0 : i32, i32
  }
  func.func @transform_4(%arg0: i32, %arg1: i32) -> (i32, i32) {
    %c0_i32 = arith.constant 0 : i32
    %c0_i32_0 = arith.constant 0 : i32
    %c0_i32_1 = arith.constant 0 : i32
    return %c0_i32, %c0_i32_0 : i32, i32
  }
  func.func @transform_5(%arg0: i32, %arg1: i32) -> (i32, i32) {
    %c0_i32 = arith.constant 0 : i32
    %c0_i32_0 = arith.constant 0 : i32
    %c0_i32_1 = arith.constant 0 : i32
    return %c0_i32, %c0_i32_0 : i32, i32
  }
  func.func @transform_6(%arg0: i32, %arg1: i32) -> (i32, i32) {
    %c0_i32 = arith.constant 0 : i32
    %c0_i32_0 = arith.constant 0 : i32
    %c0_i32_1 = arith.constant 0 : i32
    return %c0_i32, %c0_i32_0 : i32, i32
  }
  func.func @transform_7(%arg0: i32, %arg1: i32) -> (i32, i32) {
    %c0_i32 = arith.constant 0 : i32
    %c0_i32_0 = arith.constant 0 : i32
    %c0_i32_1 = arith.constant 0 : i32
    return %c0_i32, %c0_i32_0 : i32, i32
  }
  func.func @transform_8(%arg0: i32, %arg1: i32) -> (i32, i32) {
    %c0_i32 = arith.constant 0 : i32
    %c0_i32_0 = arith.constant 0 : i32
    %c0_i32_1 = arith.constant 0 : i32
    return %c0_i32, %c0_i32_0 : i32, i32
  }
  func.func @transform_9(%arg0: i32, %arg1: i32) -> (i32, i32, i32) {
    %c0_i32 = arith.constant 0 : i32
    %c0_i32_0 = arith.constant 0 : i32
    return %arg0, %arg1, %c0_i32 : i32, i32, i32
  }
}

</mosaic_0001>

<llo_original>
// kernel: tpu_custom_call.1
$region0: #{tpu_custom_call.1}
  #allocation0 [shape = 'u32[]', space=smem, size = 0x4, offset = 0x4, fixed_abs, tag = 'smem constant byte address 0x4 - core index']
  #allocation1 [shape = 'u32[144,128]{1,0:T(1,128)}', space=vmem, size = 0x12000, scoped, tag = 'internal scratch']
  %s0 = inlined_call_operand.vmem [shape: f32[2,16,4], index: 0, kind: input, shape index: {}]
  %s1 = inlined_call_operand.vmem [shape: f32[2,1,8,4], index: 1, kind: input, shape index: {}]
  %s2 = inlined_call_operand.vmem [shape: f32[2,1,8,4], index: 2, kind: input, shape index: {}]
  %s3 = inlined_call_operand.vmem [shape: f32[12,8], index: 3, kind: input, shape index: {}]
  %s4 = inlined_call_operand.vmem [shape: f32[24,8], index: 4, kind: input, shape index: {}]
  %s5 = inlined_call_operand.vmem [shape: f32[1,8], index: 5, kind: input, shape index: {}]
  %s6 = inlined_call_operand.vmem [shape: f32[1,8], index: 6, kind: input, shape index: {}]
  %s7 = inlined_call_operand.vmem [shape: f32[1,8], index: 7, kind: input, shape index: {}]
  %s8 = inlined_call_operand.vmem [shape: f32[1,8], index: 8, kind: input, shape index: {}]
  %s9 = inlined_call_operand.hbm [shape: f32[2,4,8], index: 9, kind: output, shape index: {}]
  %s10 = sld [smem:[#allocation0]]
  $region69: #{tpu_custom_call.1} parent=0
    _
  %s12 = ssub.s32 1, %s10
  %s13 = scalar_select 0, %s12, %s10
  $region1: #{tpu_custom_call.1} parent=0
    #allocation2 [shape = 'u8[4096]{0}', space=vmem, size = 0x1000, scoped, tag = 'output window, operand 0']
    #allocation3 [shape = 's32[2]{0}', space=sflag, size = 0x8, scoped, tag = 'scoped memory for tpu_custom_call.1']
    %14 = vsyncpa [#allocation3], 0
    %s15 = scalar_lea.sflag [#allocation3], 1
    %16 = vsyncpa %s15, 0
    loop: start=0, step=1, limit=4
    $region2: #{tpu_custom_call.1} parent=1 // loop_pre_header
      _
    $region3: #{tpu_custom_call.1} parent=1 // loop_header
      %s18 = sphi 0, %s22
      %p19 = scmp.ge.s32.totalorder %s18, 4
      %s25 = sphi 0, %s37
      %s26 = sphi 0, %s33
      %s27 = sphi 0, %s25
      %s28 = sphi 0, %s26
      %s29 = sphi 0, %s27
      %s30 = sphi 0, %s28
      %s42 = sphi 0, %s44
      %s45 = sphi 0, %s42
      %s46 = sphi 0, %s45
      %s62 = sphi 0, %s46
      %s70 = sphi 0, %s72
      %s73 = sphi 0, %s70
      %s74 = sphi 0, %s73
      %s90 = sphi 0, %s74
      %s98 = sphi 0, %s100
      %s101 = sphi 0, %s98
      %s102 = sphi 0, %s101
      %s118 = sphi 0, %s102
      %s122 = sphi 0, %s122
      %s124 = sphi 0, %s122
      %s125 = sphi 0, %s124
      %s139 = sphi 0, %s125
      %s143 = sphi 0, %s143
      %s145 = sphi 0, %s143
      %s146 = sphi 0, %s145
      %s160 = sphi 0, %s146
      %s164 = sphi 0, %s164
      %s166 = sphi 0, %s164
      %s167 = sphi 0, %s166
      %s181 = sphi 0, %s167
      %s185 = sphi 0, %s185
      %s187 = sphi 0, %s185
      %s188 = sphi 0, %s187
      %s202 = sphi 0, %s188
      %s206 = sphi 0, %s206
      %s208 = sphi 0, %s206
      %s209 = sphi 0, %s208
      %s223 = sphi 0, %s209
      %s227 = sphi 0, %s227
      %s229 = sphi 0, %s227
      %s230 = sphi 0, %s229
      %s244 = sphi 0, %s230
      %s252 = sphi 0, %s254
      %s255 = sphi 0, %s252
      %s256 = sphi 0, %s255
      %s272 = sphi 0, %s256
    $region4: #{tpu_custom_call.1} parent=1 // loop_header_branch
      %21 = sbr.rel (%p19) target = $region8
    $region5: #{tpu_custom_call.1} parent=1 // loop_body
      %s23 = ssub.s32 %s18, 1
      %s24 = ssub.s32 %s18, 2
      %s31 = sadd.s32 1, %s26
      %p32 = scmp.ge.s32.totalorder %s31, 1
      %s33 = scalar_select %p32, 0, %s31
      %s34 = sadd.s32 1, %s25
      %s35 = scalar_select %p32, %s34, %s25
      %p36 = scmp.ge.s32.totalorder %s35, 2
      %s37 = scalar_select %p36, 0, %s35
      %s38 = ssub.s32 %s25, %s37
      %s39 = ssub.s32 %s26, %s33
      %s40 = sor.u32 %s38, %s39
      %p41 = scmp.eq.s32.totalorder %s40, 0
      %s43 = sadd.s32 %s42, 1
      %s44 = scalar_select %p41, %s42, %s43
      %p47 = pneg %p41
      %p48 = scmp.eq.s32.totalorder %s18, 1
      %p49 = por %p47, %p48
      %p50 = scmp.ne.s32.totalorder %s42, %s45
      %p51 = scmp.eq.s32.totalorder %s18, 0
      %p52 = por %p50, %p51
      %p53 = scmp.ne.s32.totalorder %s42, %s45
      %p54 = scmp.eq.s32.totalorder %s23, 1
      %p55 = por %p53, %p54
      %p56 = scmp.ne.s32.totalorder %s45, %s46
      %p57 = scmp.eq.s32.totalorder %s23, 0
      %p58 = por %p56, %p57
      %p59 = scmp.ne.s32.totalorder %s45, %s46
      %p60 = scmp.eq.s32.totalorder %s24, 1
      %p61 = por %p59, %p60
      %p63 = scmp.ne.s32.totalorder %s46, %s62
      %p64 = scmp.eq.s32.totalorder %s24, 0
      %p65 = por %p63, %p64
      %s66 = ssub.s32 %s25, %s37
      %s67 = ssub.s32 %s26, %s33
      %s68 = sor.u32 %s66, %s67
      %p69 = scmp.eq.s32.totalorder %s68, 0
      %s71 = sadd.s32 %s70, 1
      %s72 = scalar_select %p69, %s70, %s71
      %p75 = pneg %p69
      %p76 = scmp.eq.s32.totalorder %s18, 1
      %p77 = por %p75, %p76
      %p78 = scmp.ne.s32.totalorder %s70, %s73
      %p79 = scmp.eq.s32.totalorder %s18, 0
      %p80 = por %p78, %p79
      %p81 = scmp.ne.s32.totalorder %s70, %s73
      %p82 = scmp.eq.s32.totalorder %s23, 1
      %p83 = por %p81, %p82
      %p84 = scmp.ne.s32.totalorder %s73, %s74
      %p85 = scmp.eq.s32.totalorder %s23, 0
      %p86 = por %p84, %p85
      %p87 = scmp.ne.s32.totalorder %s73, %s74
      %p88 = scmp.eq.s32.totalorder %s24, 1
      %p89 = por %p87, %p88
      %p91 = scmp.ne.s32.totalorder %s74, %s90
      %p92 = scmp.eq.s32.totalorder %s24, 0
      %p93 = por %p91, %p92
      %s94 = ssub.s32 %s25, %s37
      %s95 = ssub.s32 %s26, %s33
      %s96 = sor.u32 %s94, %s95
      %p97 = scmp.eq.s32.totalorder %s96, 0
      %s99 = sadd.s32 %s98, 1
      %s100 = scalar_select %p97, %s98, %s99
      %p103 = pneg %p97
      %p104 = scmp.eq.s32.totalorder %s18, 1
      %p105 = por %p103, %p104
      %p106 = scmp.ne.s32.totalorder %s98, %s101
      %p107 = scmp.eq.s32.totalorder %s18, 0
      %p108 = por %p106, %p107
      %p109 = scmp.ne.s32.totalorder %s98, %s101
      %p110 = scmp.eq.s32.totalorder %s23, 1
      %p111 = por %p109, %p110
      %p112 = scmp.ne.s32.totalorder %s101, %s102
      %p113 = scmp.eq.s32.totalorder %s23, 0
      %p114 = por %p112, %p113
      %p115 = scmp.ne.s32.totalorder %s101, %s102
      %p116 = scmp.eq.s32.totalorder %s24, 1
      %p117 = por %p115, %p116
      %p119 = scmp.ne.s32.totalorder %s102, %s118
      %p120 = scmp.eq.s32.totalorder %s24, 0
      %p121 = por %p119, %p120
      %s123 = sadd.s32 %s122, 1
      %p126 = scmp.eq.s32.totalorder %s18, 1
      %p127 = scmp.ne.s32.totalorder %s122, %s124
      %p128 = scmp.eq.s32.totalorder %s18, 0
      %p129 = por %p127, %p128
      %p130 = scmp.ne.s32.totalorder %s122, %s124
      %p131 = scmp.eq.s32.totalorder %s23, 1
      %p132 = por %p130, %p131
      %p133 = scmp.ne.s32.totalorder %s124, %s125
      %p134 = scmp.eq.s32.totalorder %s23, 0
      %p135 = por %p133, %p134
      %p136 = scmp.ne.s32.totalorder %s124, %s125
      %p137 = scmp.eq.s32.totalorder %s24, 1
      %p138 = por %p136, %p137
      %p140 = scmp.ne.s32.totalorder %s125, %s139
      %p141 = scmp.eq.s32.totalorder %s24, 0
      %p142 = por %p140, %p141
      %s144 = sadd.s32 %s143, 1
      %p147 = scmp.eq.s32.totalorder %s18, 1
      %p148 = scmp.ne.s32.totalorder %s143, %s145
      %p149 = scmp.eq.s32.totalorder %s18, 0
      %p150 = por %p148, %p149
      %p151 = scmp.ne.s32.totalorder %s143, %s145
      %p152 = scmp.eq.s32.totalorder %s23, 1
      %p153 = por %p151, %p152
      %p154 = scmp.ne.s32.totalorder %s145, %s146
      %p155 = scmp.eq.s32.totalorder %s23, 0
      %p156 = por %p154, %p155
      %p157 = scmp.ne.s32.totalorder %s145, %s146
      %p158 = scmp.eq.s32.totalorder %s24, 1
      %p159 = por %p157, %p158
      %p161 = scmp.ne.s32.totalorder %s146, %s160
      %p162 = scmp.eq.s32.totalorder %s24, 0
      %p163 = por %p161, %p162
      %s165 = sadd.s32 %s164, 1
      %p168 = scmp.eq.s32.totalorder %s18, 1
      %p169 = scmp.ne.s32.totalorder %s164, %s166
      %p170 = scmp.eq.s32.totalorder %s18, 0
      %p171 = por %p169, %p170
      %p172 = scmp.ne.s32.totalorder %s164, %s166
      %p173 = scmp.eq.s32.totalorder %s23, 1
      %p174 = por %p172, %p173
      %p175 = scmp.ne.s32.totalorder %s166, %s167
      %p176 = scmp.eq.s32.totalorder %s23, 0
      %p177 = por %p175, %p176
      %p178 = scmp.ne.s32.totalorder %s166, %s167
      %p179 = scmp.eq.s32.totalorder %s24, 1
      %p180 = por %p178, %p179
      %p182 = scmp.ne.s32.totalorder %s167, %s181
      %p183 = scmp.eq.s32.totalorder %s24, 0
      %p184 = por %p182, %p183
      %s186 = sadd.s32 %s185, 1
      %p189 = scmp.eq.s32.totalorder %s18, 1
      %p190 = scmp.ne.s32.totalorder %s185, %s187
      %p191 = scmp.eq.s32.totalorder %s18, 0
      %p192 = por %p190, %p191
      %p193 = scmp.ne.s32.totalorder %s185, %s187
      %p194 = scmp.eq.s32.totalorder %s23, 1
      %p195 = por %p193, %p194
      %p196 = scmp.ne.s32.totalorder %s187, %s188
      %p197 = scmp.eq.s32.totalorder %s23, 0
      %p198 = por %p196, %p197
      %p199 = scmp.ne.s32.totalorder %s187, %s188
      %p200 = scmp.eq.s32.totalorder %s24, 1
      %p201 = por %p199, %p200
      %p203 = scmp.ne.s32.totalorder %s188, %s202
      %p204 = scmp.eq.s32.totalorder %s24, 0
      %p205 = por %p203, %p204
      %s207 = sadd.s32 %s206, 1
      %p210 = scmp.eq.s32.totalorder %s18, 1
      %p211 = scmp.ne.s32.totalorder %s206, %s208
      %p212 = scmp.eq.s32.totalorder %s18, 0
      %p213 = por %p211, %p212
      %p214 = scmp.ne.s32.totalorder %s206, %s208
      %p215 = scmp.eq.s32.totalorder %s23, 1
      %p216 = por %p214, %p215
      %p217 = scmp.ne.s32.totalorder %s208, %s209
      %p218 = scmp.eq.s32.totalorder %s23, 0
      %p219 = por %p217, %p218
      %p220 = scmp.ne.s32.totalorder %s208, %s209
      %p221 = scmp.eq.s32.totalorder %s24, 1
      %p222 = por %p220, %p221
      %p224 = scmp.ne.s32.totalorder %s209, %s223
      %p225 = scmp.eq.s32.totalorder %s24, 0
      %p226 = por %p224, %p225
      %s228 = sadd.s32 %s227, 1
      %p231 = scmp.eq.s32.totalorder %s18, 1
      %p232 = scmp.ne.s32.totalorder %s227, %s229
      %p233 = scmp.eq.s32.totalorder %s18, 0
      %p234 = por %p232, %p233
      %p235 = scmp.ne.s32.totalorder %s227, %s229
      %p236 = scmp.eq.s32.totalorder %s23, 1
      %p237 = por %p235, %p236
      %p238 = scmp.ne.s32.totalorder %s229, %s230
      %p239 = scmp.eq.s32.totalorder %s23, 0
      %p240 = por %p238, %p239
      %p241 = scmp.ne.s32.totalorder %s229, %s230
      %p242 = scmp.eq.s32.totalorder %s24, 1
      %p243 = por %p241, %p242
      %p245 = scmp.ne.s32.totalorder %s230, %s244
      %p246 = scmp.eq.s32.totalorder %s24, 0
      %p247 = por %p245, %p246
      %s248 = ssub.s32 %s25, %s37
      %s249 = ssub.s32 %s26, %s33
      %s250 = sor.u32 %s248, %s249
      %p251 = scmp.eq.s32.totalorder %s250, 0
      %s253 = sadd.s32 %s252, 1
      %s254 = scalar_select %p251, %s252, %s253
      %p257 = pneg %p251
      %p258 = scmp.eq.s32.totalorder %s18, 1
      %p259 = por %p257, %p258
      %p260 = scmp.ne.s32.totalorder %s252, %s255
      %p261 = scmp.eq.s32.totalorder %s18, 0
      %p262 = por %p260, %p261
      %p263 = scmp.ne.s32.totalorder %s252, %s255
      %p264 = scmp.eq.s32.totalorder %s23, 1
      %p265 = por %p263, %p264
      %p266 = scmp.ne.s32.totalorder %s255, %s256
      %p267 = scmp.eq.s32.totalorder %s23, 0
      %p268 = por %p266, %p267
      %p269 = scmp.ne.s32.totalorder %s255, %s256
      %p270 = scmp.eq.s32.totalorder %s24, 1
      %p271 = por %p269, %p270
      %p273 = scmp.ne.s32.totalorder %s256, %s272
      %p274 = scmp.eq.s32.totalorder %s24, 0
      %p275 = por %p273, %p274
      %p276 = scmp.le.s32.totalorder 1, %s18
      %p277 = scmp.lt.s32.totalorder %s18, 3
      %p278 = pnand %p276, %p277
      %p279 = pneg %p278
      // Predicated region
      $region9: #{tpu_custom_call.1} parent=5 // pred_check
        _
      $region10: #{tpu_custom_call.1} parent=5 // pred_check_branch
        %281 = sbr.rel (%p278) target = $region12
      $region11: #{tpu_custom_call.1} parent=5 // pred_region
        %s282 = ssub.s32 %s18, 1
        // Predicated region
        $region13: #{tpu_custom_call.1} parent=11 // pred_check
          %p283 = pneg %p135
        $region14: #{tpu_custom_call.1} parent=11 // pred_check_branch
          %285 = sbr.rel (%p283) target = $region16
        $region15: #{tpu_custom_call.1} parent=11 // pred_region
          _
        $region16: #{tpu_custom_call.1} parent=11 // pred_fallthru
          _
        // Predicated region
        $region17: #{tpu_custom_call.1} parent=11 // pred_check
          %p286 = pneg %p156
        $region18: #{tpu_custom_call.1} parent=11 // pred_check_branch
          %288 = sbr.rel (%p286) target = $region20
        $region19: #{tpu_custom_call.1} parent=11 // pred_region
          _
        $region20: #{tpu_custom_call.1} parent=11 // pred_fallthru
          _
        // Predicated region
        $region21: #{tpu_custom_call.1} parent=11 // pred_check
          %p289 = pneg %p177
        $region22: #{tpu_custom_call.1} parent=11 // pred_check_branch
          %291 = sbr.rel (%p289) target = $region24
        $region23: #{tpu_custom_call.1} parent=11 // pred_region
          _
        $region24: #{tpu_custom_call.1} parent=11 // pred_fallthru
          _
        // Predicated region
        $region25: #{tpu_custom_call.1} parent=11 // pred_check
          %p292 = pneg %p198
        $region26: #{tpu_custom_call.1} parent=11 // pred_check_branch
          %294 = sbr.rel (%p292) target = $region28
        $region27: #{tpu_custom_call.1} parent=11 // pred_region
          _
        $region28: #{tpu_custom_call.1} parent=11 // pred_fallthru
          _
        // Predicated region
        $region29: #{tpu_custom_call.1} parent=11 // pred_check
          %p295 = pneg %p219
        $region30: #{tpu_custom_call.1} parent=11 // pred_check_branch
          %297 = sbr.rel (%p295) target = $region32
        $region31: #{tpu_custom_call.1} parent=11 // pred_region
          _
        $region32: #{tpu_custom_call.1} parent=11 // pred_fallthru
          _
        // Predicated region
        $region33: #{tpu_custom_call.1} parent=11 // pred_check
          %p298 = pneg %p240
        $region34: #{tpu_custom_call.1} parent=11 // pred_check_branch
          %300 = sbr.rel (%p298) target = $region36
        $region35: #{tpu_custom_call.1} parent=11 // pred_region
          _
        $region36: #{tpu_custom_call.1} parent=11 // pred_fallthru
          _
      $region12: #{tpu_custom_call.1} parent=5 // pred_fallthru
        _
      %p301 = scmp.lt.s32.totalorder %s18, 2
      // Predicated region
      $region37: #{tpu_custom_call.1} parent=5 // pred_check
        %p302 = pneg %p301
      $region38: #{tpu_custom_call.1} parent=5 // pred_check_branch
        %304 = sbr.rel (%p302) target = $region40
      $region39: #{tpu_custom_call.1} parent=5 // pred_region
        // Predicated region
        $region41: #{tpu_custom_call.1} parent=39 // pred_check
          %p305 = pneg %p52
        $region42: #{tpu_custom_call.1} parent=39 // pred_check_branch
          %307 = sbr.rel (%p305) target = $region44
        $region43: #{tpu_custom_call.1} parent=39 // pred_region
          %s308 = smul.u32 2, %s26
          %p309 = scmp.lt.s32.totalorder %s25, 1
          %s310 = scalar_select %p309, %s25, 1
          %p311 = scmp.lt.s32.totalorder %s308, 1
          %s312 = scalar_select %p311, %s308, 1
          %s313 = smul.addr %s310, 2
          %s314 = sadd.s32 %s312, %s313
          %s315 = smul.addr %s314, 8
          %s316 = scalar_lea.vmem %s0, %s315
          %s317 = smul.u32 2, %s26
        $region44: #{tpu_custom_call.1} parent=39 // pred_fallthru
          _
        // Predicated region
        $region45: #{tpu_custom_call.1} parent=39 // pred_check
          %p318 = pneg %p80
        $region46: #{tpu_custom_call.1} parent=39 // pred_check_branch
          %320 = sbr.rel (%p318) target = $region48
        $region47: #{tpu_custom_call.1} parent=39 // pred_region
          %p321 = scmp.lt.s32.totalorder %s25, 1
          %s322 = scalar_select %p321, %s25, 1
          %p323 = scmp.lt.s32.totalorder %s26, 0
          %s324 = scalar_select %p323, %s26, 0
          %s325 = sadd.s32 %s324, %s322
          %s326 = smul.addr %s325, 8
          %s327 = scalar_lea.vmem %s1, %s326
        $region48: #{tpu_custom_call.1} parent=39 // pred_fallthru
          _
        // Predicated region
        $region49: #{tpu_custom_call.1} parent=39 // pred_check
          %p328 = pneg %p108
        $region50: #{tpu_custom_call.1} parent=39 // pred_check_branch
          %330 = sbr.rel (%p328) target = $region52
        $region51: #{tpu_custom_call.1} parent=39 // pred_region
          %p331 = scmp.lt.s32.totalorder %s25, 1
          %s332 = scalar_select %p331, %s25, 1
          %p333 = scmp.lt.s32.totalorder %s26, 0
          %s334 = scalar_select %p333, %s26, 0
          %s335 = sadd.s32 %s334, %s332
          %s336 = smul.addr %s335, 8
          %s337 = scalar_lea.vmem %s2, %s336
        $region52: #{tpu_custom_call.1} parent=39 // pred_fallthru
          _
      $region40: #{tpu_custom_call.1} parent=5 // pred_fallthru
        _
      %p338 = scmp.le.s32.totalorder 1, %s18
      %p339 = scmp.lt.s32.totalorder %s18, 3
      %p340 = pnand %p338, %p339
      %p341 = pneg %p340
      // Predicated region
      $region53: #{tpu_custom_call.1} parent=5 // pred_check
        _
      $region54: #{tpu_custom_call.1} parent=5 // pred_check_branch
        %343 = sbr.rel (%p340) target = $region56
      $region55: #{tpu_custom_call.1} parent=5 // pred_region
        %s344 = ssub.s32 %s18, 1
        %s345 = smul.u32 2, %s28
        %p346 = scmp.lt.s32.totalorder %s27, 1
        %s347 = scalar_select %p346, %s27, 1
        %p348 = scmp.lt.s32.totalorder %s345, 1
        %s349 = scalar_select %p348, %s345, 1
        %s350 = smul.addr %s347, 2
        %s351 = sadd.s32 %s349, %s350
        %s352 = smul.addr %s351, 8
        %s353 = scalar_lea.vmem %s0, %s352
        %p354 = pneg %p58
        %p355 = pneg %p55
        %p356 = scmp.lt.s32.totalorder %s27, 1
        %s357 = scalar_select %p356, %s27, 1
        %p358 = scmp.lt.s32.totalorder %s28, 0
        %s359 = scalar_select %p358, %s28, 0
        %s360 = sadd.s32 %s359, %s357
        %s361 = smul.addr %s360, 8
        %s362 = scalar_lea.vmem %s1, %s361
        %p363 = pneg %p86
        %p364 = pneg %p83
        %p365 = scmp.lt.s32.totalorder %s27, 1
        %s366 = scalar_select %p365, %s27, 1
        %p367 = scmp.lt.s32.totalorder %s28, 0
        %s368 = scalar_select %p367, %s28, 0
        %s369 = sadd.s32 %s368, %s366
        %s370 = smul.addr %s369, 8
        %s371 = scalar_lea.vmem %s2, %s370
        %p372 = pneg %p114
        %p373 = pneg %p111
        %p374 = pneg %p135
        %p375 = pneg %p132
        %p376 = pneg %p156
        %p377 = pneg %p153
        %p378 = pneg %p177
        %p379 = pneg %p174
        %p380 = pneg %p198
        %p381 = pneg %p195
        %p382 = pneg %p219
        %p383 = pneg %p216
        %p384 = pneg %p240
        %p385 = pneg %p237
        %p386 = pneg %p268
        %p387 = pneg %p265
        %s388 = sand.u32 %s255, 1
        %s389 = scalar_lea.sflag [#allocation3], %s388
        %s390 = sand.u32 %s255, 1
        %s391 = smul.addr %s390, 4
        %s392 = scalar_lea.vmem [#allocation2], %s391
        %s393 = smul.u32 2, %s28
        %p394 = scmp.lt.s32.totalorder %s27, 1
        %s395 = scalar_select %p394, %s27, 1
        %p396 = scmp.lt.s32.totalorder %s393, 1
        %s397 = scalar_select %p396, %s393, 1
        %s398 = smul.addr %s395, 2
        %s399 = sadd.s32 %s397, %s398
        %s400 = smul.addr %s399, 8
        %s401 = scalar_lea.vmem %s0, %s400
        %s402 = smul.u32 2, %s28
        %p403 = scmp.lt.s32.totalorder %s27, 1
        %s404 = scalar_select %p403, %s27, 1
        %p405 = scmp.lt.s32.totalorder %s28, 0
        %s406 = scalar_select %p405, %s28, 0
        %s407 = sadd.s32 %s406, %s404
        %s408 = smul.addr %s407, 8
        %s409 = scalar_lea.vmem %s1, %s408
        %p410 = scmp.lt.s32.totalorder %s27, 1
        %s411 = scalar_select %p410, %s27, 1
        %p412 = scmp.lt.s32.totalorder %s28, 0
        %s413 = scalar_select %p412, %s28, 0
        %s414 = sadd.s32 %s413, %s411
        %s415 = smul.addr %s414, 8
        %s416 = scalar_lea.vmem %s2, %s415
        %v417 = vld [vmem:[%s409] sm:$0xff]
        %v418 = vld [vmem:[%s401] sm:$0xff]
        %v419 = vld [vmem:[%s401 + $0x8] sm:$0xff]
        %v420 = vld [vmem:[%s416] sm:$0xff]
        %vm425 = vcmask 1046528
        %v426 = vrot.slane %v417, 1
        %v427 = vrot.slane %v418, 1
        %v428 = vsel %vm425, %v426, %v427
        %v429 = vrot.slane %v419, 1
        %v430 = vsel %vm425, %v427, %v429
        %v431 = vrot.slane %v420, 1
        %v432 = vsel %vm425, %v429, %v431
        %433 = vrot.lane.b32.xlu0 %v428, 4
        %v434 = vpop.permute.xlu0 %433
        %435 = vrot.lane.b32.xlu0 %v430, 4
        %v436 = vpop.permute.xlu0 %435
        %437 = vrot.lane.b32.xlu0 %v432, 4
        %v438 = vpop.permute.xlu0 %437
        %439 = vrot.lane.b32.xlu0 %v431, 4
        %v440 = vpop.permute.xlu0 %439
        %vm445 = vcmask 1045504
        %v446 = vrot.slane %v417, 2
        %v447 = vrot.slane %v418, 2
        %v448 = vsel %vm445, %v446, %v447
        %v449 = vrot.slane %v419, 2
        %v450 = vsel %vm445, %v447, %v449
        %v451 = vrot.slane %v420, 2
        %v452 = vsel %vm445, %v449, %v451
        %453 = vrot.lane.b32.xlu0 %v448, 8
        %v454 = vpop.permute.xlu0 %453
        %455 = vrot.lane.b32.xlu0 %v450, 8
        %v456 = vpop.permute.xlu0 %455
        %457 = vrot.lane.b32.xlu0 %v452, 8
        %v458 = vpop.permute.xlu0 %457
        %459 = vrot.lane.b32.xlu0 %v451, 8
        %v460 = vpop.permute.xlu0 %459
        %vm465 = vcmask 31744
        %v466 = vsel %vm465, %v417, %v434
        %v467 = vsel %vm465, %v418, %v436
        %v468 = vsel %vm465, %v419, %v438
        %v469 = vsel %vm465, %v420, %v440
        %vm470 = vcmask 64512
        %v471 = vsel %vm470, %v466, %v454
        %v472 = vsel %vm470, %v467, %v456
        %v473 = vsel %vm470, %v468, %v458
        %v474 = vsel %vm470, %v469, %v460
        %v475 = vld [vmem:[%s3] sm:$0xff]
        %v476 = vld [vmem:[%s3 + $0x8] sm:$0xf]
        %vm481 = vcmask 1044480
        %v482 = vrot.slane %v471, 3
        %v483 = vrot.slane %v472, 3
        %v484 = vsel %vm481, %v482, %v483
        %v485 = vrot.slane %v473, 3
        %v486 = vsel %vm481, %v483, %v485
        %v487 = vrot.slane %v474, 3
        %v488 = vsel %vm481, %v485, %v487
        %vm489 = vcmask 97280
        %v490 = vsel %vm489, %v484, 0
        %v492 = vsel %vm489, %v486, 0
        %v494 = vsel %vm489, %v488, 0
        %vm496 = vcmask 1043456
        %v498 = vsel %vm496, %v476, 0
        %500 = vmatprep.subr.mxu0 0.0
        %501 = vmatpush1.msra.mxu0 %v475
        %502 = vmatprep.subr.mxu0 0.0
        %503 = vmatpush1.msra.mxu0 %v498
        %504 = vmatprep.subr.mxu0 0.0
        %505 = vmatpush1.msra.mxu0 0.0
        %506 = vmatprep.subr.mxu0 0.0
        %507 = vmatpush1.msra.mxu0 0.0
        %508 = vmatprep.subr.mxu0 0.0
        %509 = vmatpush1.msra.mxu0 0.0
        %510 = vmatprep.subr.mxu0 0.0
        %511 = vmatpush1.msra.mxu0 0.0
        %512 = vmatprep.subr.mxu0 0.0
        %513 = vmatpush1.msra.mxu0 0.0
        %514 = vmatprep.subr.mxu0 0.0
        %515 = vmatpush1.msra.mxu0 0.0
        %516 = vmatprep.subr.mxu0 0.0
        %517 = vmatpush1.msra.mxu0 0.0
        %518 = vmatprep.subr.mxu0 0.0
        %519 = vmatpush1.msra.mxu0 0.0
        %520 = vmatprep.subr.mxu0 0.0
        %521 = vmatpush1.msra.mxu0 0.0
        %522 = vmatprep.subr.mxu0 0.0
        %523 = vmatpush1.msra.mxu0 0.0
        %524 = vmatprep.subr.mxu0 0.0
        %525 = vmatpush1.msra.mxu0 0.0
        %526 = vmatprep.subr.mxu0 0.0
        %527 = vmatpush1.msra.mxu0 0.0
        %528 = vmatprep.subr.mxu0 0.0
        %529 = vmatpush1.msra.mxu0 0.0
        %530 = vmatprep.subr.mxu0 0.0
        %531 = vmatpush1.msra.mxu0 0.0
        %532 = vmatprep.subr.mxu0 0.0
        %533 = vmatpush1.msra.mxu0 0.0
        %534 = vmatprep.subr.mxu0 0.0
        %535 = vmatpush1.msra.mxu0 0.0
        %536 = vmatprep.subr.mxu0 0.0
        %537 = vmatpush1.msra.mxu0 0.0
        %538 = vmatprep.subr.mxu0 0.0
        %539 = vmatpush1.msra.mxu0 0.0
        %540 = vmatprep.subr.mxu0 0.0
        %541 = vmatpush1.msra.mxu0 0.0
        %542 = vmatprep.subr.mxu0 0.0
        %543 = vmatpush1.msra.mxu0 0.0
        %544 = vmatprep.subr.mxu0 0.0
        %545 = vmatpush1.msra.mxu0 0.0
        %546 = vmatprep.subr.mxu0 0.0
        %547 = vmatpush1.msra.mxu0 0.0
        %548 = vmatprep.subr.mxu0 0.0
        %549 = vmatpush1.msra.mxu0 0.0
        %550 = vmatprep.subr.mxu0 0.0
        %551 = vmatpush1.msra.mxu0 0.0
        %552 = vmatprep.subr.mxu0 0.0
        %553 = vmatpush1.msra.mxu0 0.0
        %554 = vmatprep.subr.mxu0 0.0
        %555 = vmatpush1.msra.mxu0 0.0
        %556 = vmatprep.subr.mxu0 0.0
        %557 = vmatpush1.msra.mxu0 0.0
        %558 = vmatprep.subr.mxu0 0.0
        %559 = vmatpush1.msra.mxu0 0.0
        %560 = vmatprep.subr.mxu0 0.0
        %561 = vmatpush1.msra.mxu0 0.0
        %562 = vmatprep.subr.mxu0 0.0
        %563 = vmatpush1.msra.mxu0 0.0
        %564 = vmatprep.mubr.f32.mxu0 0.0
        %565 = vmatmul.mubr.f32.gmra.mrb[0].mxu0 %v490
        %v566 = vpop.f32.mrb[0].mxu0
        %v567 = vadd.f32 0.0, %v566
        %v568 = vpop.f32.mrb[0].mxu0
        %569 = vmatprep.mubr.f32.mxu0 0.0
        %570 = vmatmul.mubr.f32.gmra.mrb[0].mxu0 %v492
        %v571 = vpop.f32.mrb[0].mxu0
        %v572 = vadd.f32 0.0, %v571
        %v573 = vpop.f32.mrb[0].mxu0
        %574 = vmatprep.mubr.f32.mxu0 0.0
        %575 = vmatmul.mubr.f32.gmra.mrb[0].mxu0 %v494
        %v576 = vpop.f32.mrb[0].mxu0
        %v577 = vadd.f32 0.0, %v576
        %v578 = vpop.f32.mrb[0].mxu0
        %579 = vdwg.mxu0
        %v580 = vld [vmem:[%s5] sm:$0x1]
        %v582 = vlaneseq
        %v583 = vshrl.u32 %v582, 7
        %v584 = vsub.s32 0, %v583
        %v585 = vrot.slane %v580, %v584
        %v587 = vmul.f32 %v567, %v585
        %v588 = vmul.f32 %v572, %v585
        %v589 = vmul.f32 %v577, %v585
        %v590 = vld [vmem:[%s6] sm:$0x1]
        %v592 = vlaneseq
        %v593 = vshrl.u32 %v592, 7
        %v594 = vsub.s32 0, %v593
        %v595 = vrot.slane %v590, %v594
        %v597 = vadd.f32 %v587, %v595
        %v598 = vadd.f32 %v588, %v595
        %v599 = vadd.f32 %v589, %v595
        %v600 = vmax.f32 %v597, 0.0
        %v601 = vmax.f32 %v598, 0.0
        %v602 = vmax.f32 %v599, 0.0
        %s603 = smul.u32 %s28, 16
        %s604 = ssub.s32 %s603, 4
        %v605 = vlaneseq
        %v606 = vshrl.u32 %v605, 7
        %v607 = vadd.s32 %v606, 8
        %v608 = vadd.s32 %v606, 16
        %v609 = vstv %s604
        %v610 = vadd.s32 %v609, %v606
        %v611 = vadd.s32 %v609, %v607
        %v612 = vadd.s32 %v609, %v608
        %vm613 = vcmp.ge.s32.totalorder %v610, 0
        %vm614 = vcmp.ge.s32.totalorder %v611, 0
        %vm615 = vcmp.ge.s32.totalorder %v612, 0
        %vm616 = vcmp.lt.s32.totalorder %v610, 16
        %vm617 = vcmp.lt.s32.totalorder %v611, 16
        %vm618 = vcmp.lt.s32.totalorder %v612, 16
        %vm619 = vmand %vm613, %vm616
        %vm620 = vmand %vm614, %vm617
        %vm621 = vmand %vm615, %vm618
        %v622 = vsel %vm619, 1, 0
        %v623 = vsel %vm620, 1, 0
        %v624 = vsel %vm621, 1, 0
        %vm625 = vcmp.eq.s32.totalorder %v622, 1
        %vm626 = vcmp.eq.s32.totalorder %v623, 1
        %vm627 = vcmp.eq.s32.totalorder %v624, 1
        %v628 = vsel %vm625, %v600, 0.0
        %v629 = vsel %vm626, %v601, 0.0
        %v630 = vsel %vm627, %v602, 0.0
        %v634 = vrot.slane %v628, 2
        %v635 = vrot.slane %v629, 2
        %v636 = vsel %vm445, %v634, %v635
        %v637 = vrot.slane %v630, 2
        %v638 = vsel %vm445, %v635, %v637
        %639 = vrot.lane.b32.xlu0 %v636, 8
        %v640 = vpop.permute.xlu0 %639
        %641 = vrot.lane.b32.xlu0 %v638, 8
        %v642 = vpop.permute.xlu0 %641
        %643 = vrot.lane.b32.xlu0 %v637, 8
        %v644 = vpop.permute.xlu0 %643
        %v648 = vrot.slane %v628, 4
        %v649 = vrot.slane %v629, 4
        %v650 = vsel %vm496, %v648, %v649
        %v651 = vrot.slane %v630, 4
        %v652 = vsel %vm496, %v649, %v651
        %653 = vrot.lane.b32.xlu0 %v650, 16
        %v654 = vpop.permute.xlu0 %653
        %655 = vrot.lane.b32.xlu0 %v652, 16
        %v656 = vpop.permute.xlu0 %655
        %657 = vrot.lane.b32.xlu0 %v651, 16
        %v658 = vpop.permute.xlu0 %657
        %v662 = vsel %vm470, %v628, %v640
        %v663 = vsel %vm470, %v629, %v642
        %v664 = vsel %vm470, %v630, %v644
        %vm665 = vcmask 130048
        %v666 = vsel %vm665, %v662, %v654
        %v667 = vsel %vm665, %v663, %v656
        %v668 = vsel %vm665, %v664, %v658
        %v669 = vld [vmem:[%s4] sm:$0xff]
        %v670 = vld [vmem:[%s4 + $0x8] sm:$0xff]
        %v671 = vld [vmem:[%s4 + $0x10] sm:$0xff]
        %v675 = vrot.slane %v666, 2
        %v676 = vrot.slane %v667, 2
        %v677 = vsel %vm445, %v675, %v676
        %v678 = vrot.slane %v668, 2
        %v679 = vsel %vm445, %v676, %v678
        %vm680 = vcmask 195584
        %v681 = vsel %vm680, %v677, 0
        %v683 = vsel %vm680, %v679, 0
        %685 = vmatprep.subr.mxu0 0.0
        %686 = vmatpush1.msra.mxu0 %v669
        %687 = vmatprep.subr.mxu0 0.0
        %688 = vmatpush1.msra.mxu0 %v670
        %689 = vmatprep.subr.mxu0 0.0
        %690 = vmatpush1.msra.mxu0 %v671
        %691 = vmatprep.subr.mxu0 0.0
        %692 = vmatpush1.msra.mxu0 0.0
        %693 = vmatprep.subr.mxu0 0.0
        %694 = vmatpush1.msra.mxu0 0.0
        %695 = vmatprep.subr.mxu0 0.0
        %696 = vmatpush1.msra.mxu0 0.0
        %697 = vmatprep.subr.mxu0 0.0
        %698 = vmatpush1.msra.mxu0 0.0
        %699 = vmatprep.subr.mxu0 0.0
        %700 = vmatpush1.msra.mxu0 0.0
        %701 = vmatprep.subr.mxu0 0.0
        %702 = vmatpush1.msra.mxu0 0.0
        %703 = vmatprep.subr.mxu0 0.0
        %704 = vmatpush1.msra.mxu0 0.0
        %705 = vmatprep.subr.mxu0 0.0
        %706 = vmatpush1.msra.mxu0 0.0
        %707 = vmatprep.subr.mxu0 0.0
        %708 = vmatpush1.msra.mxu0 0.0
        %709 = vmatprep.subr.mxu0 0.0
        %710 = vmatpush1.msra.mxu0 0.0
        %711 = vmatprep.subr.mxu0 0.0
        %712 = vmatpush1.msra.mxu0 0.0
        %713 = vmatprep.subr.mxu0 0.0
        %714 = vmatpush1.msra.mxu0 0.0
        %715 = vmatprep.subr.mxu0 0.0
        %716 = vmatpush1.msra.mxu0 0.0
        %717 = vmatprep.subr.mxu0 0.0
        %718 = vmatpush1.msra.mxu0 0.0
        %719 = vmatprep.subr.mxu0 0.0
        %720 = vmatpush1.msra.mxu0 0.0
        %721 = vmatprep.subr.mxu0 0.0
        %722 = vmatpush1.msra.mxu0 0.0
        %723 = vmatprep.subr.mxu0 0.0
        %724 = vmatpush1.msra.mxu0 0.0
        %725 = vmatprep.subr.mxu0 0.0
        %726 = vmatpush1.msra.mxu0 0.0
        %727 = vmatprep.subr.mxu0 0.0
        %728 = vmatpush1.msra.mxu0 0.0
        %729 = vmatprep.subr.mxu0 0.0
        %730 = vmatpush1.msra.mxu0 0.0
        %731 = vmatprep.subr.mxu0 0.0
        %732 = vmatpush1.msra.mxu0 0.0
        %733 = vmatprep.subr.mxu0 0.0
        %734 = vmatpush1.msra.mxu0 0.0
        %735 = vmatprep.subr.mxu0 0.0
        %736 = vmatpush1.msra.mxu0 0.0
        %737 = vmatprep.subr.mxu0 0.0
        %738 = vmatpush1.msra.mxu0 0.0
        %739 = vmatprep.subr.mxu0 0.0
        %740 = vmatpush1.msra.mxu0 0.0
        %741 = vmatprep.subr.mxu0 0.0
        %742 = vmatpush1.msra.mxu0 0.0
        %743 = vmatprep.subr.mxu0 0.0
        %744 = vmatpush1.msra.mxu0 0.0
        %745 = vmatprep.subr.mxu0 0.0
        %746 = vmatpush1.msra.mxu0 0.0
        %747 = vmatprep.subr.mxu0 0.0
        %748 = vmatpush1.msra.mxu0 0.0
        %749 = vmatprep.mubr.f32.mxu0 0.0
        %750 = vmatmul.mubr.f32.gmra.mrb[0].mxu0 %v681
        %v751 = vpop.f32.mrb[0].mxu0
        %v752 = vadd.f32 0.0, %v751
        %v753 = vpop.f32.mrb[0].mxu0
        %754 = vmatprep.mubr.f32.mxu0 0.0
        %755 = vmatmul.mubr.f32.gmra.mrb[0].mxu0 %v683
        %v756 = vpop.f32.mrb[0].mxu0
        %v757 = vadd.f32 0.0, %v756
        %v758 = vpop.f32.mrb[0].mxu0
        %759 = vdwg.mxu0
        %v760 = vld [vmem:[%s7] sm:$0x1]
        %v762 = vlaneseq
        %v763 = vshrl.u32 %v762, 7
        %v764 = vsub.s32 0, %v763
        %v765 = vrot.slane %v760, %v764
        %v767 = vmul.f32 %v752, %v765
        %v768 = vmul.f32 %v757, %v765
        %v769 = vld [vmem:[%s8] sm:$0x1]
        %v771 = vlaneseq
        %v772 = vshrl.u32 %v771, 7
        %v773 = vsub.s32 0, %v772
        %v774 = vrot.slane %v769, %v773
        %v776 = vadd.f32 %v767, %v774
        %v777 = vadd.f32 %v768, %v774
        %v778 = vmax.f32 %v776, 0.0
        %v779 = vmax.f32 %v777, 0.0
        %v782 = vcombine.high %v778, %v778
        %v783 = vcombine.high %v779, %v779
        %vm786 = vcmask 60416
        %v787 = vsel %vm786, %v778, -inf
        %v788 = vrot.slane %v787, 4
        %v789 = vmax.f32 %v787, %v788
        %v790 = vrot.slane %v789, 2
        %v791 = vmax.f32 %v789, %v790
        %v792 = vrot.slane %v791, 1
        %v793 = vmax.f32 %v791, %v792
        %v794 = vsel %vm786, %v782, -inf
        %v795 = vrot.slane %v794, 4
        %v796 = vmax.f32 %v794, %v795
        %v797 = vrot.slane %v796, 2
        %v798 = vmax.f32 %v796, %v797
        %v799 = vrot.slane %v798, 1
        %v800 = vmax.f32 %v798, %v799
        %v801 = vsel %vm786, %v779, -inf
        %v802 = vrot.slane %v801, 4
        %v803 = vmax.f32 %v801, %v802
        %v804 = vrot.slane %v803, 2
        %v805 = vmax.f32 %v803, %v804
        %v806 = vrot.slane %v805, 1
        %v807 = vmax.f32 %v805, %v806
        %v808 = vsel %vm786, %v783, -inf
        %v809 = vrot.slane %v808, 4
        %v810 = vmax.f32 %v808, %v809
        %v811 = vrot.slane %v810, 2
        %v812 = vmax.f32 %v810, %v811
        %v813 = vrot.slane %v812, 1
        %v814 = vmax.f32 %v812, %v813
        %vm819 = vcmask 1041409
        %v820 = vsel %vm819, %v800, %v793
        %vm821 = vcmask 1042434
        %v822 = vsel %vm821, %v807, %v820
        %vm823 = vcmask 1043459
        %v824 = vsel %vm823, %v814, %v822
        %826 = vst.msk [vmem:[%s392] sm:$0xf] %vm786, %v824
        %s827 = sand.u32 %s255, 1
        %s828 = scalar_lea.sflag [#allocation3], %s827
        %s829 = sand.u32 %s255, 1
        %s830 = smul.addr %s829, 4
        %s831 = scalar_lea.vmem [#allocation2], %s830
        // Predicated region
        $region57: #{tpu_custom_call.1} parent=55 // pred_check
          %p832 = pneg %p265
        $region58: #{tpu_custom_call.1} parent=55 // pred_check_branch
          %834 = sbr.rel (%p832) target = $region60
        $region59: #{tpu_custom_call.1} parent=55 // pred_region
          %s836 = ssub.s32 64, 64
          %837 = vsyncadd %s828, %s836
          %s838 = sadd.s32 %s28, %s27
          %s839 = smul.addr %s838, 64
          %s840 = scalar_lea.hbm %s9, %s839
          %s842 = sshll.u32 %s831, 4
          %s843 = int_to_ptr.vmem [resolvable:$true] %s842
          %845 = dma.vmem_to_hbm [thread:$0]  %s843, 64, %s840, %s828
        $region60: #{tpu_custom_call.1} parent=55 // pred_fallthru
          _
      $region56: #{tpu_custom_call.1} parent=5 // pred_fallthru
        _
      %p846 = scmp.le.s32.totalorder 2, %s18
      // Predicated region
      $region61: #{tpu_custom_call.1} parent=5 // pred_check
        %p847 = pneg %p846
      $region62: #{tpu_custom_call.1} parent=5 // pred_check_branch
        %849 = sbr.rel (%p847) target = $region64
      $region63: #{tpu_custom_call.1} parent=5 // pred_region
        %s850 = ssub.s32 %s18, 2
        // Predicated region
        $region65: #{tpu_custom_call.1} parent=63 // pred_check
          %p851 = pneg %p271
        $region66: #{tpu_custom_call.1} parent=63 // pred_check_branch
          %853 = sbr.rel (%p851) target = $region68
        $region67: #{tpu_custom_call.1} parent=63 // pred_region
          %s854 = sand.u32 %s256, 1
          %s855 = scalar_lea.sflag [#allocation3], %s854
          %s856 = sand.u32 %s256, 1
          %s857 = smul.addr %s856, 4
          %s858 = scalar_lea.vmem [#allocation2], %s857
          %859 = dma.done %s855, 64
        $region68: #{tpu_custom_call.1} parent=63 // pred_fallthru
          _
      $region64: #{tpu_custom_call.1} parent=5 // pred_fallthru
        _
    $region6: #{tpu_custom_call.1} parent=1 // loop_footer
      %s22 = sadd.s32 1, %s18
    $region7: #{tpu_custom_call.1} parent=1 // loop_footer_branch
      %17 = sbr.rel target = $region3
    $region8: #{tpu_custom_call.1} parent=1 // loop_exit
      _
    %860 = vsyncpa [#allocation3], 1
    %s861 = scalar_lea.sflag [#allocation3], 1
    %862 = vsyncpa %s861, 1

</llo_original>
